<compile_context>
chip_gen: v7x
topology: tpu7x:2x2x1
jax: 0.10.0
libtpu: 0.0.40
codegen_flags: <defaults>
</compile_context>

<pallas_src>
import jax
import jax.numpy as jnp
from jax.experimental import pallas as pl
from jax.experimental.pallas import tpu as pltpu

EPS_LN = 1e-5    # torch.nn.LayerNorm default eps
EPS_STD = 1e-9   # reference does std + 1e-9; folded into rsqrt(var + eps)


# ---------------------------------------------------------------------------
# Fused forward builder (returns a jitted pure function)
# ---------------------------------------------------------------------------
def _make_fused_forward(num_layers, hidden_size, output_size, input_size,
                        out_pad, max_rows):
    H = hidden_size
    DIN0 = input_size

    def fwd(x, y, prev_best_y, states_packed, w_stack, b_stack, wout, bout):
        B = x.shape[0]
        standardize = (B != 1)          # static: mirrors `if input_x.shape[0] != 1`

        # best_y update fused into the jit (reference: min(best_y, y) first)
        best_y = jnp.minimum(prev_best_y, y)

        def kernel(x_ref, y_ref, by_ref, st_ref, w_ref, b_ref,
                   wout_ref, bout_ref, out_ref, st_out_ref):
            # ---- LayerNorm(x) over last dim (fresh LN: weight=1, bias=0) ----
            xv = x_ref[...]
            mu = jnp.mean(xv, axis=-1, keepdims=True)
            var = jnp.mean(jnp.square(xv - mu), axis=-1, keepdims=True)
            xn = (xv - mu) * jax.lax.rsqrt(var + EPS_LN)

            # ---- concat(x_ln, y, best_y) once, lane-wise ----
            cur = jnp.concatenate([xn, y_ref[...], by_ref[...]], axis=-1)

            # ---- batch standardization (per-feature, unbiased) ----
            if standardize:
                m = jnp.mean(cur, axis=0, keepdims=True)
                d = cur - m
                var_b = jnp.sum(d * d, axis=0, keepdims=True) / (B - 1)
                # rsqrt(var + eps): single exact EUP op (review suggestion)
                cur = d * jax.lax.rsqrt(var_b + EPS_STD)

            d_in = DIN0
            h_last = None
            for l in range(num_layers):
                rows = d_in + H
                st = st_ref[l]                       # (B, 4H) packed [h|c|n|m]
                h_prev = st[:, 0:H]
                c_prev = st[:, H:2 * H]
                n_prev = st[:, 2 * H:3 * H]
                m_prev = st[:, 3 * H:4 * H]

                # ONE fused matmul per layer: [cur | h_prev] @ W_cat  -> (B,4H)
                act = jnp.concatenate([cur, h_prev], axis=-1)     # (B, rows)
                w_l = w_ref[l][:rows, :]                          # static slice
                pre = (jnp.dot(act, w_l,
                               preferred_element_type=jnp.float32)
                       + b_ref[l])

                z = jnp.tanh(pre[:, 0:H])
                i_pre = pre[:, H:2 * H]
                f_pre = pre[:, 2 * H:3 * H]
                o = jax.nn.sigmoid(pre[:, 3 * H:4 * H])

                # stabilized exponential gating
                m_new = jnp.maximum(f_pre + m_prev, i_pre)
                i_g = jnp.exp(i_pre - m_new)
                f_g = jnp.exp(f_pre + m_prev - m_new)
                c_new = f_g * c_prev + i_g * z
                n_new = f_g * n_prev + i_g
                h_new = o * (c_new / n_new)          # exact divide (parity)

                # lane-dense packed state writeback: one (B, 4H=128) store
                st_out_ref[l] = jnp.concatenate(
                    [h_new, c_new, n_new, m_new], axis=-1)

                cur = h_new
                d_in = H
                h_last = h_new

            # output Linear, padded to 128 lanes for an unmasked store
            out_ref[...] = (jnp.dot(h_last, wout_ref[...],
                                    preferred_element_type=jnp.float32)
                            + bout_ref[...])

        vmem = pl.BlockSpec(memory_space=pltpu.MemorySpace.VMEM)

        rows0 = DIN0 + H
        flops = int(2 * B * (rows0 * 4 * H
                             + (num_layers - 1) * (2 * H) * 4 * H
                             + H * out_pad))
        transcendentals = int(num_layers * 4 * B * H)
        bytes_accessed = int(4 * (x.size + 2 * y.size + 2 * states_packed.size
                                  + w_stack.size + b_stack.size
                                  + wout.size + bout.size + B * out_pad))

        out_padded, new_packed = pl.pallas_call(
            kernel,
            out_shape=(jax.ShapeDtypeStruct((B, out_pad), jnp.float32),
                       jax.ShapeDtypeStruct((num_layers, B, 4 * H),
                                            jnp.float32)),
            in_specs=[vmem] * 8,
            out_specs=(vmem, vmem),
            input_output_aliases={3: 1},     # states in -> states out
            cost_estimate=pl.CostEstimate(flops=flops,
                                          transcendentals=transcendentals,
                                          bytes_accessed=bytes_accessed),
        )(x, y, best_y, states_packed, w_stack, b_stack, wout, bout)

        out = out_padded[:, :output_size]
        new_states = [tuple(new_packed[l, :, g * H:(g + 1) * H]
                            for g in range(4))
                      for l in range(num_layers)]
        return out, new_states, best_y

    return jax.jit(fwd)


# ---------------------------------------------------------------------------
# CustomXLSTM module (JAX wrapper mirroring the PyTorch forward)
# ---------------------------------------------------------------------------
class CustomXLSTM:
    def __init__(self, input_size, output_size, hidden_size,
                 num_layers=2, dropout_prob=0.55, key=None):
        # dropout_prob stored for parity; unused in the reference forward pass.
        self.num_layers = num_layers
        self.hidden_size = hidden_size
        self.output_size = output_size
        self.input_size = input_size
        self.best_y = None

        key = jax.random.PRNGKey(42) if key is None else key
        H = hidden_size

        # stacked fused weights: rows [W_in ; R] (zero-padded to max_rows),
        # columns [z|i|f|o]
        rows0 = input_size + H
        rows_rest = 2 * H
        self.max_rows = max(rows0, rows_rest)
        w_list, b_list = [], []
        for i in range(num_layers):
            d_in = input_size if i == 0 else H
            rows = d_in + H
            key, kw, kr, kb = jax.random.split(key, 4)
            w_in = (1.0 / jnp.sqrt(d_in)) * jax.random.normal(
                kw, (d_in, 4 * H), jnp.float32)
            r = (1.0 / jnp.sqrt(H)) * jax.random.normal(
                kr, (H, 4 * H), jnp.float32)
            w = jnp.concatenate([w_in, r], axis=0)
            if rows < self.max_rows:
                w = jnp.pad(w, ((0, self.max_rows - rows), (0, 0)))
            w_list.append(w)
            b_list.append(0.1 * jax.random.normal(kb, (1, 4 * H), jnp.float32))
        self.w_stack = jnp.stack(w_list, axis=0)   # (L, max_rows, 4H)
        self.b_stack = jnp.stack(b_list, axis=0)   # (L, 1, 4H)

        # output Linear padded to a 128-lane slab (lane-dense store)
        self.out_pad = ((output_size + 127) // 128) * 128
        key, k_w, k_b = jax.random.split(key, 3)
        h2o_w = (1.0 / jnp.sqrt(H)) * jax.random.normal(
            k_w, (H, output_size), jnp.float32)
        h2o_b = 0.1 * jax.random.normal(k_b, (1, output_size), jnp.float32)
        pad = self.out_pad - output_size
        self.h2o_w_pad = jnp.pad(h2o_w, ((0, 0), (0, pad)))
        self.h2o_b_pad = jnp.pad(h2o_b, ((0, 0), (0, pad)))

        self._fwd = _make_fused_forward(num_layers, hidden_size, output_size,
                                        input_size, self.out_pad,
                                        self.max_rows)

    def init_hidden(self, batch_size, device=None):
        self.best_y = None
        return None

    def __call__(self, x, y, initial_states=None, states_key=None):
        # First call: best_y = y (min(y, y) = y inside the jit).
        prev_best = y if self.best_y is None else self.best_y

        # TODO(synk): the reference prints input_x and torch.isnan diagnostics;
        #             those host-side logging side-effects are not reproduced.

        B = x.shape[0]
        H = self.hidden_size
        if initial_states is None:
            states_key = (jax.random.PRNGKey(7) if states_key is None
                          else states_key)
            # packed lane-dense format (num_layers, B, 4H) = [h|c|n|m]
            states_packed = jax.random.normal(
                states_key, (self.num_layers, B, 4 * H), jnp.float32)
        else:
            states_packed = jnp.stack(
                [jnp.concatenate(st, axis=1) for st in initial_states], axis=0)

        out, new_states, new_best = self._fwd(
            x, y, prev_best, states_packed,
            self.w_stack, self.b_stack, self.h2o_w_pad, self.h2o_b_pad)

        self.best_y = new_best
        return out, new_states


# ---------------------------------------------------------------------------
# main
# ---------------------------------------------------------------------------
if __name__ == "__main__":
    B, DX, DY = 8, 16, 8              # batch = 8 -> full f32 sublane tile
    INPUT_SIZE = DX + 2 * DY          # cat((x, y, best_y), dim=1) = 32
    HIDDEN_SIZE = 32                  # 4H = 128 -> lane-dense gate/state tiles
    OUTPUT_SIZE = 8
    NUM_LAYERS = 2

    key = jax.random.PRNGKey(0)
    kx, ky = jax.random.split(key)
    x = jax.random.normal(kx, (B, DX), jnp.float32)
    y = jax.random.normal(ky, (B, DY), jnp.float32)

    model = CustomXLSTM(INPUT_SIZE, OUTPUT_SIZE, HIDDEN_SIZE,
                        num_layers=NUM_LAYERS, key=jax.random.PRNGKey(123))

    out, new_states = model(x, y)
    out = jax.block_until_ready(out)
    for st in new_states:
        for t in st:
            jax.block_until_ready(t)

    # second call exercises the best_y-min path with the cached jit
    out2, _ = model(x, 0.5 * y)
    out2 = jax.block_until_ready(out2)

    assert out.shape == (B, OUTPUT_SIZE)
    assert out2.shape == (B, OUTPUT_SIZE)
    assert len(new_states) == NUM_LAYERS
    assert all(t.shape == (B, HIDDEN_SIZE) for st in new_states for t in st)
    assert not bool(jnp.any(jnp.isnan(out)))
    assert not bool(jnp.any(jnp.isnan(out2)))
    print("KERNEL_OK")
</pallas_src>

<mosaic_0001>
module attributes {stable_mosaic.version = 11 : i64} {
  func.func @kernel(%arg0: memref<8x16xf32, #tpu.memory_space<vmem>>, %arg1: memref<8x8xf32, #tpu.memory_space<vmem>>, %arg2: memref<8x8xf32, #tpu.memory_space<vmem>>, %arg3: memref<2x8x128xf32, #tpu.memory_space<vmem>>, %arg4: memref<2x64x128xf32, #tpu.memory_space<vmem>>, %arg5: memref<2x1x128xf32, #tpu.memory_space<vmem>>, %arg6: memref<32x128xf32, #tpu.memory_space<vmem>>, %arg7: memref<1x128xf32, #tpu.memory_space<vmem>>, %arg8: memref<8x128xf32, #tpu.memory_space<vmem>>, %arg9: memref<2x8x128xf32, #tpu.memory_space<vmem>>) attributes {dimension_semantics = [], scalar_prefetch = 0 : i64, scratch_operands = 0 : i64, tpu.core_type = #tpu.core_type<tc>} {
    %c0 = arith.constant 0 : index
    %c0_0 = arith.constant 0 : index
    %0 = vector.load %arg0[%c0, %c0_0] : memref<8x16xf32, #tpu.memory_space<vmem>>, vector<8x16xf32>
    %cst = arith.constant dense<0.000000e+00> : vector<8xf32>
    %1 = vector.multi_reduction <add>, %0, %cst [1] : vector<8x16xf32> to vector<8xf32>
    %2 = vector.shape_cast %1 : vector<8xf32> to vector<8x1xf32>
    %cst_1 = arith.constant 1.600000e+01 : f32
    %3 = vector.broadcast %cst_1 : f32 to vector<8x1xf32>
    %4 = arith.divf %2, %3 : vector<8x1xf32>
    %5 = vector.broadcast %4 : vector<8x1xf32> to vector<8x16xf32>
    %6 = arith.subf %0, %5 : vector<8x16xf32>
    %7 = arith.mulf %6, %6 : vector<8x16xf32>
    %cst_2 = arith.constant dense<0.000000e+00> : vector<8xf32>
    %8 = vector.multi_reduction <add>, %7, %cst_2 [1] : vector<8x16xf32> to vector<8xf32>
    %9 = vector.shape_cast %8 : vector<8xf32> to vector<8x1xf32>
    %cst_3 = arith.constant 1.600000e+01 : f32
    %10 = vector.broadcast %cst_3 : f32 to vector<8x1xf32>
    %11 = arith.divf %9, %10 : vector<8x1xf32>
    %12 = vector.broadcast %4 : vector<8x1xf32> to vector<8x16xf32>
    %13 = arith.subf %0, %12 : vector<8x16xf32>
    %cst_4 = arith.constant 9.99999974E-6 : f32
    %14 = vector.broadcast %cst_4 : f32 to vector<8x1xf32>
    %15 = arith.addf %11, %14 : vector<8x1xf32>
    %16 = math.rsqrt %15 : vector<8x1xf32>
    %17 = vector.broadcast %16 : vector<8x1xf32> to vector<8x16xf32>
    %18 = arith.mulf %13, %17 : vector<8x16xf32>
    %c0_5 = arith.constant 0 : index
    %c0_6 = arith.constant 0 : index
    %19 = vector.load %arg1[%c0_5, %c0_6] : memref<8x8xf32, #tpu.memory_space<vmem>>, vector<8x8xf32>
    %c0_7 = arith.constant 0 : index
    %c0_8 = arith.constant 0 : index
    %20 = vector.load %arg2[%c0_7, %c0_8] : memref<8x8xf32, #tpu.memory_space<vmem>>, vector<8x8xf32>
    %21 = tpu.concatenate %18, %19, %20 in 1 : vector<8x16xf32>, vector<8x8xf32>, vector<8x8xf32> -> vector<8x32xf32>
    %cst_9 = arith.constant dense<0.000000e+00> : vector<32xf32>
    %22 = vector.multi_reduction <add>, %21, %cst_9 [0] : vector<8x32xf32> to vector<32xf32>
    %23 = vector.shape_cast %22 : vector<32xf32> to vector<1x32xf32>
    %cst_10 = arith.constant 8.000000e+00 : f32
    %24 = vector.broadcast %cst_10 : f32 to vector<1x32xf32>
    %25 = arith.divf %23, %24 : vector<1x32xf32>
    %26 = vector.broadcast %25 : vector<1x32xf32> to vector<8x32xf32>
    %27 = arith.subf %21, %26 : vector<8x32xf32>
    %28 = arith.mulf %27, %27 : vector<8x32xf32>
    %cst_11 = arith.constant dense<0.000000e+00> : vector<32xf32>
    %29 = vector.multi_reduction <add>, %28, %cst_11 [0] : vector<8x32xf32> to vector<32xf32>
    %30 = vector.shape_cast %29 : vector<32xf32> to vector<1x32xf32>
    %cst_12 = arith.constant 7.000000e+00 : f32
    %31 = vector.broadcast %cst_12 : f32 to vector<1x32xf32>
    %32 = arith.divf %30, %31 : vector<1x32xf32>
    %cst_13 = arith.constant 9.99999971E-10 : f32
    %33 = vector.broadcast %cst_13 : f32 to vector<1x32xf32>
    %34 = arith.addf %32, %33 : vector<1x32xf32>
    %35 = math.rsqrt %34 : vector<1x32xf32>
    %36 = vector.broadcast %35 : vector<1x32xf32> to vector<8x32xf32>
    %37 = arith.mulf %27, %36 : vector<8x32xf32>
    %c0_14 = arith.constant 0 : index
    %c0_15 = arith.constant 0 : index
    %c0_16 = arith.constant 0 : index
    %38 = vector.load %arg3[%c0_14, %c0_15, %c0_16] : memref<2x8x128xf32, #tpu.memory_space<vmem>>, vector<1x8x128xf32>
    %39 = vector.shape_cast %38 : vector<1x8x128xf32> to vector<8x128xf32>
    %40 = vector.extract_strided_slice %39 {offsets = [0, 0], sizes = [8, 32], strides = [1, 1]} : vector<8x128xf32> to vector<8x32xf32>
    %41 = vector.extract_strided_slice %39 {offsets = [0, 32], sizes = [8, 32], strides = [1, 1]} : vector<8x128xf32> to vector<8x32xf32>
    %42 = vector.extract_strided_slice %39 {offsets = [0, 64], sizes = [8, 32], strides = [1, 1]} : vector<8x128xf32> to vector<8x32xf32>
    %43 = vector.extract_strided_slice %39 {offsets = [0, 96], sizes = [8, 32], strides = [1, 1]} : vector<8x128xf32> to vector<8x32xf32>
    %44 = tpu.concatenate %37, %40 in 1 : vector<8x32xf32>, vector<8x32xf32> -> vector<8x64xf32>
    %c0_17 = arith.constant 0 : index
    %c0_18 = arith.constant 0 : index
    %c0_19 = arith.constant 0 : index
    %45 = vector.load %arg4[%c0_17, %c0_18, %c0_19] : memref<2x64x128xf32, #tpu.memory_space<vmem>>, vector<1x64x128xf32>
    %46 = vector.shape_cast %45 : vector<1x64x128xf32> to vector<64x128xf32>
    %cst_20 = arith.constant dense<0.000000e+00> : vector<8x128xf32>
    %47 = tpu.matmul %44, %46, %cst_20 {dimension_numbers = #tpu.dot_dimension_numbers<[1], [0], [0], [1], [0, 0, 1, 1], [], []>} : vector<8x64xf32>, vector<64x128xf32>, vector<8x128xf32> -> vector<8x128xf32>
    %c0_21 = arith.constant 0 : index
    %c0_22 = arith.constant 0 : index
    %c0_23 = arith.constant 0 : index
    %48 = vector.load %arg5[%c0_21, %c0_22, %c0_23] : memref<2x1x128xf32, #tpu.memory_space<vmem>>, vector<1x1x128xf32>
    %49 = vector.shape_cast %48 : vector<1x1x128xf32> to vector<1x128xf32>
    %50 = vector.broadcast %49 : vector<1x128xf32> to vector<8x128xf32>
    %51 = arith.addf %47, %50 : vector<8x128xf32>
    %52 = vector.extract_strided_slice %51 {offsets = [0, 0], sizes = [8, 32], strides = [1, 1]} : vector<8x128xf32> to vector<8x32xf32>
    %53 = math.tanh %52 : vector<8x32xf32>
    %54 = vector.extract_strided_slice %51 {offsets = [0, 32], sizes = [8, 32], strides = [1, 1]} : vector<8x128xf32> to vector<8x32xf32>
    %55 = vector.extract_strided_slice %51 {offsets = [0, 64], sizes = [8, 32], strides = [1, 1]} : vector<8x128xf32> to vector<8x32xf32>
    %56 = vector.extract_strided_slice %51 {offsets = [0, 96], sizes = [8, 32], strides = [1, 1]} : vector<8x128xf32> to vector<8x32xf32>
    %57 = arith.negf %56 : vector<8x32xf32>
    %58 = math.exp %57 : vector<8x32xf32>
    %cst_24 = arith.constant 1.000000e+00 : f32
    %59 = vector.broadcast %cst_24 : f32 to vector<8x32xf32>
    %60 = arith.addf %59, %58 : vector<8x32xf32>
    %61 = arith.divf %59, %60 : vector<8x32xf32>
    %62 = arith.addf %55, %43 : vector<8x32xf32>
    %63 = arith.maximumf %62, %54 : vector<8x32xf32>
    %64 = arith.subf %54, %63 : vector<8x32xf32>
    %65 = math.exp %64 : vector<8x32xf32>
    %66 = arith.addf %55, %43 : vector<8x32xf32>
    %67 = arith.subf %66, %63 : vector<8x32xf32>
    %68 = math.exp %67 : vector<8x32xf32>
    %69 = arith.mulf %68, %41 : vector<8x32xf32>
    %70 = arith.mulf %65, %53 : vector<8x32xf32>
    %71 = arith.addf %69, %70 : vector<8x32xf32>
    %72 = arith.mulf %68, %42 : vector<8x32xf32>
    %73 = arith.addf %72, %65 : vector<8x32xf32>
    %74 = arith.divf %71, %73 : vector<8x32xf32>
    %75 = arith.mulf %61, %74 : vector<8x32xf32>
    %76 = tpu.concatenate %75, %71, %73, %63 in 1 : vector<8x32xf32>, vector<8x32xf32>, vector<8x32xf32>, vector<8x32xf32> -> vector<8x128xf32>
    %c0_25 = arith.constant 0 : index
    %c0_26 = arith.constant 0 : index
    %c0_27 = arith.constant 0 : index
    %77 = vector.load %arg9[%c0_25, %c0_26, %c0_27] : memref<2x8x128xf32, #tpu.memory_space<vmem>>, vector<1x8x128xf32>
    %78 = vector.shape_cast %77 : vector<1x8x128xf32> to vector<8x128xf32>
    %79 = vector.shape_cast %76 : vector<8x128xf32> to vector<1x8x128xf32>
    tpu.vector_store %arg9[%c0_25, %c0_26, %c0_27], %79 {strides = array<i32>} : memref<2x8x128xf32, #tpu.memory_space<vmem>>, vector<1x8x128xf32>,
    %c1 = arith.constant 1 : index
    %c0_28 = arith.constant 0 : index
    %c0_29 = arith.constant 0 : index
    %80 = vector.load %arg3[%c1, %c0_28, %c0_29] : memref<2x8x128xf32, #tpu.memory_space<vmem>>, vector<1x8x128xf32>
    %81 = vector.shape_cast %80 : vector<1x8x128xf32> to vector<8x128xf32>
    %82 = vector.extract_strided_slice %81 {offsets = [0, 0], sizes = [8, 32], strides = [1, 1]} : vector<8x128xf32> to vector<8x32xf32>
    %83 = vector.extract_strided_slice %81 {offsets = [0, 32], sizes = [8, 32], strides = [1, 1]} : vector<8x128xf32> to vector<8x32xf32>
    %84 = vector.extract_strided_slice %81 {offsets = [0, 64], sizes = [8, 32], strides = [1, 1]} : vector<8x128xf32> to vector<8x32xf32>
    %85 = vector.extract_strided_slice %81 {offsets = [0, 96], sizes = [8, 32], strides = [1, 1]} : vector<8x128xf32> to vector<8x32xf32>
    %86 = tpu.concatenate %75, %82 in 1 : vector<8x32xf32>, vector<8x32xf32> -> vector<8x64xf32>
    %c1_30 = arith.constant 1 : index
    %c0_31 = arith.constant 0 : index
    %c0_32 = arith.constant 0 : index
    %87 = vector.load %arg4[%c1_30, %c0_31, %c0_32] : memref<2x64x128xf32, #tpu.memory_space<vmem>>, vector<1x64x128xf32>
    %88 = vector.shape_cast %87 : vector<1x64x128xf32> to vector<64x128xf32>
    %cst_33 = arith.constant dense<0.000000e+00> : vector<8x128xf32>
    %89 = tpu.matmul %86, %88, %cst_33 {dimension_numbers = #tpu.dot_dimension_numbers<[1], [0], [0], [1], [0, 0, 1, 1], [], []>} : vector<8x64xf32>, vector<64x128xf32>, vector<8x128xf32> -> vector<8x128xf32>
    %c1_34 = arith.constant 1 : index
    %c0_35 = arith.constant 0 : index
    %c0_36 = arith.constant 0 : index
    %90 = vector.load %arg5[%c1_34, %c0_35, %c0_36] : memref<2x1x128xf32, #tpu.memory_space<vmem>>, vector<1x1x128xf32>
    %91 = vector.shape_cast %90 : vector<1x1x128xf32> to vector<1x128xf32>
    %92 = vector.broadcast %91 : vector<1x128xf32> to vector<8x128xf32>
    %93 = arith.addf %89, %92 : vector<8x128xf32>
    %94 = vector.extract_strided_slice %93 {offsets = [0, 0], sizes = [8, 32], strides = [1, 1]} : vector<8x128xf32> to vector<8x32xf32>
    %95 = math.tanh %94 : vector<8x32xf32>
    %96 = vector.extract_strided_slice %93 {offsets = [0, 32], sizes = [8, 32], strides = [1, 1]} : vector<8x128xf32> to vector<8x32xf32>
    %97 = vector.extract_strided_slice %93 {offsets = [0, 64], sizes = [8, 32], strides = [1, 1]} : vector<8x128xf32> to vector<8x32xf32>
    %98 = vector.extract_strided_slice %93 {offsets = [0, 96], sizes = [8, 32], strides = [1, 1]} : vector<8x128xf32> to vector<8x32xf32>
    %99 = arith.negf %98 : vector<8x32xf32>
    %100 = math.exp %99 : vector<8x32xf32>
    %cst_37 = arith.constant 1.000000e+00 : f32
    %101 = vector.broadcast %cst_37 : f32 to vector<8x32xf32>
    %102 = arith.addf %101, %100 : vector<8x32xf32>
    %103 = arith.divf %101, %102 : vector<8x32xf32>
    %104 = arith.addf %97, %85 : vector<8x32xf32>
    %105 = arith.maximumf %104, %96 : vector<8x32xf32>
    %106 = arith.subf %96, %105 : vector<8x32xf32>
    %107 = math.exp %106 : vector<8x32xf32>
    %108 = arith.addf %97, %85 : vector<8x32xf32>
    %109 = arith.subf %108, %105 : vector<8x32xf32>
    %110 = math.exp %109 : vector<8x32xf32>
    %111 = arith.mulf %110, %83 : vector<8x32xf32>
    %112 = arith.mulf %107, %95 : vector<8x32xf32>
    %113 = arith.addf %111, %112 : vector<8x32xf32>
    %114 = arith.mulf %110, %84 : vector<8x32xf32>
    %115 = arith.addf %114, %107 : vector<8x32xf32>
    %116 = arith.divf %113, %115 : vector<8x32xf32>
    %117 = arith.mulf %103, %116 : vector<8x32xf32>
    %118 = tpu.concatenate %117, %113, %115, %105 in 1 : vector<8x32xf32>, vector<8x32xf32>, vector<8x32xf32>, vector<8x32xf32> -> vector<8x128xf32>
    %c1_38 = arith.constant 1 : index
    %c0_39 = arith.constant 0 : index
    %c0_40 = arith.constant 0 : index
    %119 = vector.load %arg9[%c1_38, %c0_39, %c0_40] : memref<2x8x128xf32, #tpu.memory_space<vmem>>, vector<1x8x128xf32>
    %120 = vector.shape_cast %119 : vector<1x8x128xf32> to vector<8x128xf32>
    %121 = vector.shape_cast %118 : vector<8x128xf32> to vector<1x8x128xf32>
    tpu.vector_store %arg9[%c1_38, %c0_39, %c0_40], %121 {strides = array<i32>} : memref<2x8x128xf32, #tpu.memory_space<vmem>>, vector<1x8x128xf32>,
    %c0_41 = arith.constant 0 : index
    %c0_42 = arith.constant 0 : index
    %122 = vector.load %arg6[%c0_41, %c0_42] : memref<32x128xf32, #tpu.memory_space<vmem>>, vector<32x128xf32>
    %cst_43 = arith.constant dense<0.000000e+00> : vector<8x128xf32>
    %123 = tpu.matmul %117, %122, %cst_43 {dimension_numbers = #tpu.dot_dimension_numbers<[1], [0], [0], [1], [0, 0, 1, 1], [], []>} : vector<8x32xf32>, vector<32x128xf32>, vector<8x128xf32> -> vector<8x128xf32>
    %c0_44 = arith.constant 0 : index
    %c0_45 = arith.constant 0 : index
    %124 = vector.load %arg7[%c0_44, %c0_45] : memref<1x128xf32, #tpu.memory_space<vmem>>, vector<1x128xf32>
    %125 = vector.broadcast %124 : vector<1x128xf32> to vector<8x128xf32>
    %126 = arith.addf %123, %125 : vector<8x128xf32>
    %c0_46 = arith.constant 0 : index
    %c0_47 = arith.constant 0 : index
    %127 = vector.load %arg8[%c0_46, %c0_47] : memref<8x128xf32, #tpu.memory_space<vmem>>, vector<8x128xf32>
    tpu.vector_store %arg8[%c0_46, %c0_47], %126 {strides = array<i32>} : memref<8x128xf32, #tpu.memory_space<vmem>>, vector<8x128xf32>,
    return
  }
}

</mosaic_0001>

<llo_original>
// kernel: fwd.1
$region0: #{fwd.1}
  #allocation0 [shape = 'u32[]', space=smem, size = 0x4, offset = 0x4, fixed_abs, tag = 'smem constant byte address 0x4 - core index']
  #allocation1 [shape = 'u32[144,128]{1,0:T(1,128)}', space=vmem, size = 0x12000, scoped, tag = 'internal scratch']
  %s0 = inlined_call_operand.vmem [shape: f32[8,16], index: 0, kind: input, shape index: {}]
  %s1 = inlined_call_operand.vmem [shape: f32[8,8], index: 1, kind: input, shape index: {}]
  %s2 = inlined_call_operand.vmem [shape: f32[8,8], index: 2, kind: input, shape index: {}]
  %s3 = inlined_call_operand.vmem [shape: f32[2,8,128], index: 3, kind: input, shape index: {}, may-alias: {3,9}]
  %s4 = inlined_call_operand.hbm [shape: f32[2,64,128], index: 4, kind: input, shape index: {}]
  %s5 = inlined_call_operand.vmem [shape: f32[2,1,128], index: 5, kind: input, shape index: {}]
  %s6 = inlined_call_operand.vmem [shape: f32[32,128], index: 6, kind: input, shape index: {}]
  %s7 = inlined_call_operand.hbm [shape: f32[1,128], index: 7, kind: input, shape index: {}]
  %s8 = inlined_call_operand.hbm [shape: f32[8,128], index: 8, kind: output, shape index: {0}]
  %s9 = inlined_call_operand.vmem [shape: f32[2,8,128], index: 9, kind: output, shape index: {1}, may-alias: {3,9}]
  %10 = xla_tuple %s8, %s9
  %s11 = sld [smem:[#allocation0]]
  $region58: #{fwd.1} parent=0
    _
  %s13 = ssub.s32 1, %s11
  %s14 = scalar_select 0, %s13, %s11
  $region1: #{fwd.1} parent=0
    #allocation2 [shape = 'u8[65536]{0}', space=vmem, size = 0x10000, scoped, tag = 'input window, operand 4, single buffered']
    #allocation3 [shape = 's32[1]{0}', space=sflag, size = 0x4, scoped, tag = 'scoped memory for fwd.1']
    #allocation4 [shape = 's32[1]{0}', space=sflag, size = 0x4, scoped, tag = 'scoped memory for fwd.1']
    #allocation5 [shape = 'u8[512]{0}', space=vmem, size = 0x400, scoped, tag = 'input window, operand 7, single buffered']
    #allocation6 [shape = 's32[1]{0}', space=sflag, size = 0x4, scoped, tag = 'scoped memory for fwd.1']
    #allocation7 [shape = 'u8[4096]{0}', space=vmem, size = 0x1000, scoped, tag = 'output window, operand 0, single buffered']
    %15 = vsyncpa [#allocation3], 0
    %16 = vsyncpa [#allocation6], 0
    %17 = vsyncpa [#allocation4], 0
    // Predicated region
    $region2: #{fwd.1} parent=1 // pred_check
      _
    $region3: #{fwd.1} parent=1 // pred_check_branch
      %19 = sbr.rel (0) target = $region5
    $region4: #{fwd.1} parent=1 // pred_region
      _
    $region5: #{fwd.1} parent=1 // pred_fallthru
      _
    // Predicated region
    $region6: #{fwd.1} parent=1 // pred_check
      _
    $region7: #{fwd.1} parent=1 // pred_check_branch
      %21 = sbr.rel (0) target = $region9
    $region8: #{fwd.1} parent=1 // pred_region
      _
    $region9: #{fwd.1} parent=1 // pred_fallthru
      _
    // Predicated region
    $region10: #{fwd.1} parent=1 // pred_check
      _
    $region11: #{fwd.1} parent=1 // pred_check_branch
      %23 = sbr.rel (0) target = $region13
    $region12: #{fwd.1} parent=1 // pred_region
      _
    $region13: #{fwd.1} parent=1 // pred_fallthru
      _
    // Predicated region
    $region14: #{fwd.1} parent=1 // pred_check
      _
    $region15: #{fwd.1} parent=1 // pred_check_branch
      %25 = sbr.rel (0) target = $region17
    $region16: #{fwd.1} parent=1 // pred_region
      _
    $region17: #{fwd.1} parent=1 // pred_fallthru
      _
    // Predicated region
    $region18: #{fwd.1} parent=1 // pred_check
      _
    $region19: #{fwd.1} parent=1 // pred_check_branch
      %27 = sbr.rel (0) target = $region21
    $region20: #{fwd.1} parent=1 // pred_region
      %s29 = ssub.s32 2048, 2048
      %30 = vsyncadd [#allocation3], %s29
      %s31 = sshll.u32 [#allocation2], 4
      %s32 = int_to_ptr.vmem [resolvable:$true] %s31
      %37 = dma.hbm_to_vmem [thread:$0]  %s4, 2048, %s32, [#allocation3], 128, 128, 8
    $region21: #{fwd.1} parent=1 // pred_fallthru
      _
    // Predicated region
    $region22: #{fwd.1} parent=1 // pred_check
      _
    $region23: #{fwd.1} parent=1 // pred_check_branch
      %39 = sbr.rel (0) target = $region25
    $region24: #{fwd.1} parent=1 // pred_region
      _
    $region25: #{fwd.1} parent=1 // pred_fallthru
      _
    // Predicated region
    $region26: #{fwd.1} parent=1 // pred_check
      _
    $region27: #{fwd.1} parent=1 // pred_check_branch
      %41 = sbr.rel (0) target = $region29
    $region28: #{fwd.1} parent=1 // pred_region
      _
    $region29: #{fwd.1} parent=1 // pred_fallthru
      _
    // Predicated region
    $region30: #{fwd.1} parent=1 // pred_check
      _
    $region31: #{fwd.1} parent=1 // pred_check_branch
      %43 = sbr.rel (0) target = $region33
    $region32: #{fwd.1} parent=1 // pred_region
      %s45 = ssub.s32 16, 16
      %46 = vsyncadd [#allocation6], %s45
      %s48 = sshll.u32 [#allocation5], 4
      %s49 = int_to_ptr.vmem [resolvable:$true] %s48
      %51 = dma.hbm_to_vmem [thread:$0]  %s7, 16, %s49, [#allocation6]
    $region33: #{fwd.1} parent=1 // pred_fallthru
      _
    // Predicated region
    $region34: #{fwd.1} parent=1 // pred_check
      _
    $region35: #{fwd.1} parent=1 // pred_check_branch
      %53 = sbr.rel (0) target = $region37
    $region36: #{fwd.1} parent=1 // pred_region
      %54 = dma.done [#allocation3], 2048
    $region37: #{fwd.1} parent=1 // pred_fallthru
      _
    // Predicated region
    $region38: #{fwd.1} parent=1 // pred_check
      _
    $region39: #{fwd.1} parent=1 // pred_check_branch
      %56 = sbr.rel (0) target = $region41
    $region40: #{fwd.1} parent=1 // pred_region
      %57 = dma.done [#allocation6], 16
    $region41: #{fwd.1} parent=1 // pred_fallthru
      _
    %v58 = vld [vmem:[%s0] sm:$0xff]
    %vm59 = vcmask 130048
    %v60 = vsel %vm59, %v58, 0.0
    %61 = vadd.xlane.f32.xlu0 %v60
    %v62 = vpop.xlane.xlu0 %61
    %v63 = vrcp.pop 16.0
    %v64 = vmul.f32 %v62, %v63
    %v65 = vsub.f32 %v58, %v64
    %v66 = vmul.f32 %v65, %v65
    %v67 = vsel %vm59, %v66, 0.0
    %68 = vadd.xlane.f32.xlu0 %v67
    %v69 = vpop.xlane.xlu0 %68
    %v70 = vmul.f32 %v69, %v63
    %v71 = vadd.f32 %v70, 1e-05
    %v72 = vrsqrt.pop %v71
    %v73 = vmul.f32 %v65, %v72
    %v74 = vld [vmem:[%s1] sm:$0xff]
    %v75 = vld [vmem:[%s2] sm:$0xff]
    %77 = vrot.lane.b32.xlu0 %v74, 16
    %v78 = vpop.permute.xlu0 %77
    %81 = vrot.lane.b32.xlu0 %v75, 24
    %v82 = vpop.permute.xlu0 %81
    %v84 = vsel %vm59, %v73, %v78
    %vm85 = vcmask 195584
    %v86 = vsel %vm85, %v84, %v82
    %vm87 = vcmask 261120
    %v88 = vsel %vm87, %v86, 0.0
    %v89 = vrot.slane %v88, 4
    %v90 = vadd.f32 %v88, %v89
    %v91 = vrot.slane %v90, 2
    %v92 = vadd.f32 %v90, %v91
    %v93 = vrot.slane %v92, 1
    %v94 = vadd.f32 %v92, %v93
    %v95 = vrcp.pop 8.0
    %v96 = vmul.f32 %v94, %v95
    %v97 = vsub.f32 %v86, %v96
    %v98 = vmul.f32 %v97, %v97
    %v99 = vsel %vm87, %v98, 0.0
    %v100 = vrot.slane %v99, 4
    %v101 = vadd.f32 %v99, %v100
    %v102 = vrot.slane %v101, 2
    %v103 = vadd.f32 %v101, %v102
    %v104 = vrot.slane %v103, 1
    %v105 = vadd.f32 %v103, %v104
    %v106 = vrcp.pop 7.0
    %v107 = vmul.f32 %v105, %v106
    %v108 = vadd.f32 %v107, 1e-09
    %v109 = vrsqrt.pop %v108
    %v110 = vmul.f32 %v97, %v109
    %v111 = vld [vmem:[%s3] sm:$0xff]
    %113 = vrot.lane.b32.xlu0 %v111, 32
    %v114 = vpop.permute.xlu0 %113
    %v116 = vsel %vm87, %v110, %v114
    %v117 = vld [vmem:[#allocation2] sm:$0xff]
    %v118 = vld [vmem:[#allocation2 + $0x8] sm:$0xff]
    %v119 = vld [vmem:[#allocation2 + $0x10] sm:$0xff]
    %v120 = vld [vmem:[#allocation2 + $0x18] sm:$0xff]
    %v121 = vld [vmem:[#allocation2 + $0x20] sm:$0xff]
    %v122 = vld [vmem:[#allocation2 + $0x28] sm:$0xff]
    %v123 = vld [vmem:[#allocation2 + $0x30] sm:$0xff]
    %v124 = vld [vmem:[#allocation2 + $0x38] sm:$0xff]
    %v125 = vld [vmem:[%s5] sm:$0x1]
    %v127 = vlaneseq
    %v128 = vshrl.u32 %v127, 7
    %v129 = vsub.s32 0, %v128
    %v130 = vrot.slane %v125, %v129
    %vm132 = vcmask 523264
    %v134 = vsel %vm132, %v116, 0
    %136 = vmatprep.subr.mxu0 0.0
    %137 = vmatpush1.msra.mxu0 %v117
    %138 = vmatprep.subr.mxu0 0.0
    %139 = vmatpush1.msra.mxu0 %v118
    %140 = vmatprep.subr.mxu0 0.0
    %141 = vmatpush1.msra.mxu0 %v119
    %142 = vmatprep.subr.mxu0 0.0
    %143 = vmatpush1.msra.mxu0 %v120
    %144 = vmatprep.subr.mxu0 0.0
    %145 = vmatpush1.msra.mxu0 %v121
    %146 = vmatprep.subr.mxu0 0.0
    %147 = vmatpush1.msra.mxu0 %v122
    %148 = vmatprep.subr.mxu0 0.0
    %149 = vmatpush1.msra.mxu0 %v123
    %150 = vmatprep.subr.mxu0 0.0
    %151 = vmatpush1.msra.mxu0 %v124
    %152 = vmatprep.subr.mxu0 0.0
    %153 = vmatpush1.msra.mxu0 0.0
    %154 = vmatprep.subr.mxu0 0.0
    %155 = vmatpush1.msra.mxu0 0.0
    %156 = vmatprep.subr.mxu0 0.0
    %157 = vmatpush1.msra.mxu0 0.0
    %158 = vmatprep.subr.mxu0 0.0
    %159 = vmatpush1.msra.mxu0 0.0
    %160 = vmatprep.subr.mxu0 0.0
    %161 = vmatpush1.msra.mxu0 0.0
    %162 = vmatprep.subr.mxu0 0.0
    %163 = vmatpush1.msra.mxu0 0.0
    %164 = vmatprep.subr.mxu0 0.0
    %165 = vmatpush1.msra.mxu0 0.0
    %166 = vmatprep.subr.mxu0 0.0
    %167 = vmatpush1.msra.mxu0 0.0
    %168 = vmatprep.subr.mxu0 0.0
    %169 = vmatpush1.msra.mxu0 0.0
    %170 = vmatprep.subr.mxu0 0.0
    %171 = vmatpush1.msra.mxu0 0.0
    %172 = vmatprep.subr.mxu0 0.0
    %173 = vmatpush1.msra.mxu0 0.0
    %174 = vmatprep.subr.mxu0 0.0
    %175 = vmatpush1.msra.mxu0 0.0
    %176 = vmatprep.subr.mxu0 0.0
    %177 = vmatpush1.msra.mxu0 0.0
    %178 = vmatprep.subr.mxu0 0.0
    %179 = vmatpush1.msra.mxu0 0.0
    %180 = vmatprep.subr.mxu0 0.0
    %181 = vmatpush1.msra.mxu0 0.0
    %182 = vmatprep.subr.mxu0 0.0
    %183 = vmatpush1.msra.mxu0 0.0
    %184 = vmatprep.subr.mxu0 0.0
    %185 = vmatpush1.msra.mxu0 0.0
    %186 = vmatprep.subr.mxu0 0.0
    %187 = vmatpush1.msra.mxu0 0.0
    %188 = vmatprep.subr.mxu0 0.0
    %189 = vmatpush1.msra.mxu0 0.0
    %190 = vmatprep.subr.mxu0 0.0
    %191 = vmatpush1.msra.mxu0 0.0
    %192 = vmatprep.subr.mxu0 0.0
    %193 = vmatpush1.msra.mxu0 0.0
    %194 = vmatprep.subr.mxu0 0.0
    %195 = vmatpush1.msra.mxu0 0.0
    %196 = vmatprep.subr.mxu0 0.0
    %197 = vmatpush1.msra.mxu0 0.0
    %198 = vmatprep.subr.mxu0 0.0
    %199 = vmatpush1.msra.mxu0 0.0
    %200 = vmatprep.mubr.f32.mxu0 0.0
    %201 = vmatmul.mubr.f32.gmra.mrb[0].mxu0 %v134
    %v202 = vpop.f32.mrb[0].mxu0
    %v203 = vadd.f32 %v130, %v202
    %v204 = vpop.f32.mrb[0].mxu0
    %205 = vdwg.mxu0
    %v206 = vtanh.pop %v203
    %v207 = vxor.u32 %v203, 2147483648
    %v208 = vmul.f32 %v207, 1.442695
    %v209 = vpow.pop %v208
    %v210 = vadd.f32 %v209, 1.0
    %v211 = vrcp.pop %v210
    %v212 = vmul.f32 1.0, %v211
    %213 = vrot.lane.b32.xlu0 %v111, 96
    %v214 = vpop.permute.xlu0 %213
    %v216 = vadd.f32 %v203, %v214
    %218 = vrot.lane.b32.xlu0 %v203, 32
    %v219 = vpop.permute.xlu0 %218
    %v221 = vmax.f32 %v216, %v219
    %223 = vrot.lane.b32.xlu0 %v221, 96
    %v224 = vpop.permute.xlu0 %223
    %v226 = vsub.f32 %v203, %v224
    %v227 = vmul.f32 %v226, 1.442695
    %v228 = vpow.pop %v227
    %v229 = vsub.f32 %v216, %v221
    %v230 = vmul.f32 %v229, 1.442695
    %v231 = vpow.pop %v230
    %v232 = vmul.f32 %v231, %v114
    %234 = vrot.lane.b32.xlu0 %v206, 32
    %v235 = vpop.permute.xlu0 %234
    %v237 = vmul.f32 %v228, %v235
    %239 = vrot.lane.b32.xlu0 %v237, 32
    %v240 = vpop.permute.xlu0 %239
    %v242 = vadd.f32 %v232, %v240
    %v243 = vmul.f32 %v231, %v111
    %245 = vrot.lane.b32.xlu0 %v228, 32
    %v246 = vpop.permute.xlu0 %245
    %v248 = vadd.f32 %v243, %v246
    %v249 = vrcp.pop %v248
    %v250 = vmul.f32 %v242, %v249
    %252 = vrot.lane.b32.xlu0 %v250, 32
    %v253 = vpop.permute.xlu0 %252
    %v255 = vmul.f32 %v212, %v253
    %257 = vrot.lane.b32.xlu0 %v255, 32
    %v258 = vpop.permute.xlu0 %257
    %261 = vrot.lane.b32.xlu0 %v242, 96
    %v262 = vpop.permute.xlu0 %261
    %264 = vrot.lane.b32.xlu0 %v221, 32
    %v265 = vpop.permute.xlu0 %264
    %v267 = vsel %vm87, %v258, %v262
    %v268 = vsel %vm132, %v267, %v248
    %vm269 = vcmask 785408
    %v270 = vsel %vm269, %v268, %v265
    %271 = vst [vmem:[%s9] sm:$0xff] %v270
    %s272 = scalar_lea.vmem %s3, 8
    %v273 = vld [vmem:[%s272] sm:$0xff]
    %275 = vrot.lane.b32.xlu0 %v273, 32
    %v276 = vpop.permute.xlu0 %275
    %v278 = vsel %vm87, %v258, %v276
    %s279 = scalar_lea.vmem [#allocation2], 64
    %v280 = vld [vmem:[%s279] sm:$0xff]
    %v281 = vld [vmem:[%s279 + $0x8] sm:$0xff]
    %v282 = vld [vmem:[%s279 + $0x10] sm:$0xff]
    %v283 = vld [vmem:[%s279 + $0x18] sm:$0xff]
    %v284 = vld [vmem:[%s279 + $0x20] sm:$0xff]
    %v285 = vld [vmem:[%s279 + $0x28] sm:$0xff]
    %v286 = vld [vmem:[%s279 + $0x30] sm:$0xff]
    %v287 = vld [vmem:[%s279 + $0x38] sm:$0xff]
    %s288 = scalar_lea.vmem %s5, 1
    %v289 = vld [vmem:[%s288] sm:$0x1]
    %v291 = vlaneseq
    %v292 = vshrl.u32 %v291, 7
    %v293 = vsub.s32 0, %v292
    %v294 = vrot.slane %v289, %v293
    %v297 = vsel %vm132, %v278, 0
    %299 = vmatprep.subr.mxu0 0.0
    %300 = vmatpush1.msra.mxu0 %v280
    %301 = vmatprep.subr.mxu0 0.0
    %302 = vmatpush1.msra.mxu0 %v281
    %303 = vmatprep.subr.mxu0 0.0
    %304 = vmatpush1.msra.mxu0 %v282
    %305 = vmatprep.subr.mxu0 0.0
    %306 = vmatpush1.msra.mxu0 %v283
    %307 = vmatprep.subr.mxu0 0.0
    %308 = vmatpush1.msra.mxu0 %v284
    %309 = vmatprep.subr.mxu0 0.0
    %310 = vmatpush1.msra.mxu0 %v285
    %311 = vmatprep.subr.mxu0 0.0
    %312 = vmatpush1.msra.mxu0 %v286
    %313 = vmatprep.subr.mxu0 0.0
    %314 = vmatpush1.msra.mxu0 %v287
    %315 = vmatprep.subr.mxu0 0.0
    %316 = vmatpush1.msra.mxu0 0.0
    %317 = vmatprep.subr.mxu0 0.0
    %318 = vmatpush1.msra.mxu0 0.0
    %319 = vmatprep.subr.mxu0 0.0
    %320 = vmatpush1.msra.mxu0 0.0
    %321 = vmatprep.subr.mxu0 0.0
    %322 = vmatpush1.msra.mxu0 0.0
    %323 = vmatprep.subr.mxu0 0.0
    %324 = vmatpush1.msra.mxu0 0.0
    %325 = vmatprep.subr.mxu0 0.0
    %326 = vmatpush1.msra.mxu0 0.0
    %327 = vmatprep.subr.mxu0 0.0
    %328 = vmatpush1.msra.mxu0 0.0
    %329 = vmatprep.subr.mxu0 0.0
    %330 = vmatpush1.msra.mxu0 0.0
    %331 = vmatprep.subr.mxu0 0.0
    %332 = vmatpush1.msra.mxu0 0.0
    %333 = vmatprep.subr.mxu0 0.0
    %334 = vmatpush1.msra.mxu0 0.0
    %335 = vmatprep.subr.mxu0 0.0
    %336 = vmatpush1.msra.mxu0 0.0
    %337 = vmatprep.subr.mxu0 0.0
    %338 = vmatpush1.msra.mxu0 0.0
    %339 = vmatprep.subr.mxu0 0.0
    %340 = vmatpush1.msra.mxu0 0.0
    %341 = vmatprep.subr.mxu0 0.0
    %342 = vmatpush1.msra.mxu0 0.0
    %343 = vmatprep.subr.mxu0 0.0
    %344 = vmatpush1.msra.mxu0 0.0
    %345 = vmatprep.subr.mxu0 0.0
    %346 = vmatpush1.msra.mxu0 0.0
    %347 = vmatprep.subr.mxu0 0.0
    %348 = vmatpush1.msra.mxu0 0.0
    %349 = vmatprep.subr.mxu0 0.0
    %350 = vmatpush1.msra.mxu0 0.0
    %351 = vmatprep.subr.mxu0 0.0
    %352 = vmatpush1.msra.mxu0 0.0
    %353 = vmatprep.subr.mxu0 0.0
    %354 = vmatpush1.msra.mxu0 0.0
    %355 = vmatprep.subr.mxu0 0.0
    %356 = vmatpush1.msra.mxu0 0.0
    %357 = vmatprep.subr.mxu0 0.0
    %358 = vmatpush1.msra.mxu0 0.0
    %359 = vmatprep.subr.mxu0 0.0
    %360 = vmatpush1.msra.mxu0 0.0
    %361 = vmatprep.subr.mxu0 0.0
    %362 = vmatpush1.msra.mxu0 0.0
    %363 = vmatprep.mubr.f32.mxu0 0.0
    %364 = vmatmul.mubr.f32.gmra.mrb[0].mxu0 %v297
    %v365 = vpop.f32.mrb[0].mxu0
    %v366 = vadd.f32 %v294, %v365
    %v367 = vpop.f32.mrb[0].mxu0
    %368 = vdwg.mxu0
    %v369 = vtanh.pop %v366
    %v370 = vxor.u32 %v366, 2147483648
    %v371 = vmul.f32 %v370, 1.442695
    %v372 = vpow.pop %v371
    %v373 = vadd.f32 %v372, 1.0
    %v374 = vrcp.pop %v373
    %v375 = vmul.f32 1.0, %v374
    %376 = vrot.lane.b32.xlu0 %v273, 96
    %v377 = vpop.permute.xlu0 %376
    %v379 = vadd.f32 %v366, %v377
    %381 = vrot.lane.b32.xlu0 %v366, 32
    %v382 = vpop.permute.xlu0 %381
    %v384 = vmax.f32 %v379, %v382
    %386 = vrot.lane.b32.xlu0 %v384, 96
    %v387 = vpop.permute.xlu0 %386
    %v389 = vsub.f32 %v366, %v387
    %v390 = vmul.f32 %v389, 1.442695
    %v391 = vpow.pop %v390
    %v392 = vsub.f32 %v379, %v384
    %v393 = vmul.f32 %v392, 1.442695
    %v394 = vpow.pop %v393
    %v395 = vmul.f32 %v394, %v276
    %397 = vrot.lane.b32.xlu0 %v369, 32
    %v398 = vpop.permute.xlu0 %397
    %v400 = vmul.f32 %v391, %v398
    %402 = vrot.lane.b32.xlu0 %v400, 32
    %v403 = vpop.permute.xlu0 %402
    %v405 = vadd.f32 %v395, %v403
    %v406 = vmul.f32 %v394, %v273
    %408 = vrot.lane.b32.xlu0 %v391, 32
    %v409 = vpop.permute.xlu0 %408
    %v411 = vadd.f32 %v406, %v409
    %v412 = vrcp.pop %v411
    %v413 = vmul.f32 %v405, %v412
    %415 = vrot.lane.b32.xlu0 %v413, 32
    %v416 = vpop.permute.xlu0 %415
    %v418 = vmul.f32 %v375, %v416
    %420 = vrot.lane.b32.xlu0 %v418, 32
    %v421 = vpop.permute.xlu0 %420
    %424 = vrot.lane.b32.xlu0 %v405, 96
    %v425 = vpop.permute.xlu0 %424
    %427 = vrot.lane.b32.xlu0 %v384, 32
    %v428 = vpop.permute.xlu0 %427
    %v430 = vsel %vm87, %v421, %v425
    %v431 = vsel %vm132, %v430, %v411
    %v432 = vsel %vm269, %v431, %v428
    %s433 = scalar_lea.vmem %s9, 8
    %434 = vst [vmem:[%s433] sm:$0xff] %v432
    %v435 = vld [vmem:[%s6] sm:$0xff]
    %v436 = vld [vmem:[%s6 + $0x8] sm:$0xff]
    %v437 = vld [vmem:[%s6 + $0x10] sm:$0xff]
    %v438 = vld [vmem:[%s6 + $0x18] sm:$0xff]
    %v439 = vld [vmem:[#allocation5] sm:$0x1]
    %v441 = vlaneseq
    %v442 = vshrl.u32 %v441, 7
    %v443 = vsub.s32 0, %v442
    %v444 = vrot.slane %v439, %v443
    %v446 = vsel %vm87, %v421, 0
    %448 = vmatprep.subr.mxu0 0.0
    %449 = vmatpush1.msra.mxu0 %v435
    %450 = vmatprep.subr.mxu0 0.0
    %451 = vmatpush1.msra.mxu0 %v436
    %452 = vmatprep.subr.mxu0 0.0
    %453 = vmatpush1.msra.mxu0 %v437
    %454 = vmatprep.subr.mxu0 0.0
    %455 = vmatpush1.msra.mxu0 %v438
    %456 = vmatprep.subr.mxu0 0.0
    %457 = vmatpush1.msra.mxu0 0.0
    %458 = vmatprep.subr.mxu0 0.0
    %459 = vmatpush1.msra.mxu0 0.0
    %460 = vmatprep.subr.mxu0 0.0
    %461 = vmatpush1.msra.mxu0 0.0
    %462 = vmatprep.subr.mxu0 0.0
    %463 = vmatpush1.msra.mxu0 0.0
    %464 = vmatprep.subr.mxu0 0.0
    %465 = vmatpush1.msra.mxu0 0.0
    %466 = vmatprep.subr.mxu0 0.0
    %467 = vmatpush1.msra.mxu0 0.0
    %468 = vmatprep.subr.mxu0 0.0
    %469 = vmatpush1.msra.mxu0 0.0
    %470 = vmatprep.subr.mxu0 0.0
    %471 = vmatpush1.msra.mxu0 0.0
    %472 = vmatprep.subr.mxu0 0.0
    %473 = vmatpush1.msra.mxu0 0.0
    %474 = vmatprep.subr.mxu0 0.0
    %475 = vmatpush1.msra.mxu0 0.0
    %476 = vmatprep.subr.mxu0 0.0
    %477 = vmatpush1.msra.mxu0 0.0
    %478 = vmatprep.subr.mxu0 0.0
    %479 = vmatpush1.msra.mxu0 0.0
    %480 = vmatprep.subr.mxu0 0.0
    %481 = vmatpush1.msra.mxu0 0.0
    %482 = vmatprep.subr.mxu0 0.0
    %483 = vmatpush1.msra.mxu0 0.0
    %484 = vmatprep.subr.mxu0 0.0
    %485 = vmatpush1.msra.mxu0 0.0
    %486 = vmatprep.subr.mxu0 0.0
    %487 = vmatpush1.msra.mxu0 0.0
    %488 = vmatprep.subr.mxu0 0.0
    %489 = vmatpush1.msra.mxu0 0.0
    %490 = vmatprep.subr.mxu0 0.0
    %491 = vmatpush1.msra.mxu0 0.0
    %492 = vmatprep.subr.mxu0 0.0
    %493 = vmatpush1.msra.mxu0 0.0
    %494 = vmatprep.subr.mxu0 0.0
    %495 = vmatpush1.msra.mxu0 0.0
    %496 = vmatprep.subr.mxu0 0.0
    %497 = vmatpush1.msra.mxu0 0.0
    %498 = vmatprep.subr.mxu0 0.0
    %499 = vmatpush1.msra.mxu0 0.0
    %500 = vmatprep.subr.mxu0 0.0
    %501 = vmatpush1.msra.mxu0 0.0
    %502 = vmatprep.subr.mxu0 0.0
    %503 = vmatpush1.msra.mxu0 0.0
    %504 = vmatprep.subr.mxu0 0.0
    %505 = vmatpush1.msra.mxu0 0.0
    %506 = vmatprep.subr.mxu0 0.0
    %507 = vmatpush1.msra.mxu0 0.0
    %508 = vmatprep.subr.mxu0 0.0
    %509 = vmatpush1.msra.mxu0 0.0
    %510 = vmatprep.subr.mxu0 0.0
    %511 = vmatpush1.msra.mxu0 0.0
    %512 = vmatprep.mubr.f32.mxu0 0.0
    %513 = vmatmul.mubr.f32.gmra.mrb[0].mxu0 %v446
    %v514 = vpop.f32.mrb[0].mxu0
    %v515 = vadd.f32 %v444, %v514
    %v516 = vpop.f32.mrb[0].mxu0
    %517 = vdwg.mxu0
    %518 = vst [vmem:[#allocation7] sm:$0xff] %v515
    // Predicated region
    $region42: #{fwd.1} parent=1 // pred_check
      _
    $region43: #{fwd.1} parent=1 // pred_check_branch
      %520 = sbr.rel (0) target = $region45
    $region44: #{fwd.1} parent=1 // pred_region
      %s522 = ssub.s32 128, 128
      %523 = vsyncadd [#allocation4], %s522
      %s525 = sshll.u32 [#allocation7], 4
      %s526 = int_to_ptr.vmem [resolvable:$true] %s525
      %528 = dma.vmem_to_hbm [thread:$0]  %s526, 128, %s8, [#allocation4]
    $region45: #{fwd.1} parent=1 // pred_fallthru
      _
    // Predicated region
    $region46: #{fwd.1} parent=1 // pred_check
      _
    $region47: #{fwd.1} parent=1 // pred_check_branch
      %530 = sbr.rel (0) target = $region49
    $region48: #{fwd.1} parent=1 // pred_region
      _
    $region49: #{fwd.1} parent=1 // pred_fallthru
      _
    // Predicated region
    $region50: #{fwd.1} parent=1 // pred_check
      _
    $region51: #{fwd.1} parent=1 // pred_check_branch
      %532 = sbr.rel (0) target = $region53
    $region52: #{fwd.1} parent=1 // pred_region
      %533 = dma.done [#allocation4], 128
    $region53: #{fwd.1} parent=1 // pred_fallthru
      _
    // Predicated region
    $region54: #{fwd.1} parent=1 // pred_check
      _
    $region55: #{fwd.1} parent=1 // pred_check_branch
      %535 = sbr.rel (0) target = $region57
    $region56: #{fwd.1} parent=1 // pred_region
      _
    $region57: #{fwd.1} parent=1 // pred_fallthru
      _
    %536 = vsyncpa [#allocation3], 1
    %537 = vsyncpa [#allocation6], 1
    %538 = vsyncpa [#allocation4], 1

</llo_original>
